<compile_context>
chip_gen: v6e
topology: v6e:2x2x1
jax: 0.10.0
libtpu: 0.0.40
codegen_flags: <defaults>
</compile_context>

<pallas_src>
import functools
import numpy as np
import jax
import jax.numpy as jnp
from jax.experimental import pallas as pl
from jax.experimental.pallas import tpu as pltpu


# ---------------- deterministic parameter construction (mirrors __init__) -----------
def build_window(kernel_size):
    # hann window, periodic (torch.hann_window default).
    n = np.arange(kernel_size, dtype=np.float64)
    return (0.5 - 0.5 * np.cos(2.0 * np.pi * n / kernel_size)).astype(np.float32)


def build_optimal_window(window, hop_size):
    # COLA-normalized synthesis window: w / sum_i roll(w, i*hop)^2
    kernel_size = window.shape[0]
    shifts = max(kernel_size // hop_size, 1)
    stacked = np.stack([np.roll(window, hop_size * i) for i in range(shifts)], axis=0)
    norm = np.sum(stacked.astype(np.float64) ** 2, axis=0)
    return (window / norm).astype(np.float32)


def make_single_sided_basis(n_basis, kernel_size, stride, phase=None):
    """(n_basis, kernel_size) windowed cosine basis (before channel doubling)."""
    omega_a = np.pi * np.arange(n_basis, dtype=np.float64) / n_basis
    omega_b = np.pi * np.arange(n_basis, dtype=np.float64) / (2 * n_basis)
    n = np.arange(kernel_size, dtype=np.float64)
    omega_n = omega_a[:, None] * n[None, :] + omega_b[:, None]
    if phase is not None:  # trainable_phase=True: cos(omega_n + phi)
        omega_n = omega_n + np.asarray(phase, dtype=np.float64)[:, None]
    basis = np.cos(omega_n)
    optimal_window = build_optimal_window(build_window(kernel_size), stride)
    basis = optimal_window[None, :].astype(np.float64) * basis / n_basis
    return basis.astype(np.float32)


def make_effective_basis(n_basis, kernel_size, stride, onesided=True, phase=None):
    """Effective conv_transpose1d weight.

    onesided=True: cat([x, flip(x)]) . cat([b, flip(b)]) == 2 * (x . b), so the channel
    doubling is folded into a *2 scale and C stays n_basis.
    """
    b = make_single_sided_basis(n_basis, kernel_size, stride, phase)
    if onesided:
        return (2.0 * b).astype(np.float32)                          # (n_basis, K)
    return np.concatenate([b, b[::-1]], axis=0).astype(np.float32)   # (2*n_basis, K)


# -------------------------------- Pallas kernel -------------------------------------
def _decode_kernel(xi_ref, basis_ref, o_ref):
    # xi_ref:    (1, TV, Wf*C) bf16 -- TV overlap windows, each = Wf consecutive frames
    #                                  interleaved on the lane axis (aligned loads).
    # basis_ref: (Wf*C, L)     bf16 -- banded overlap-add basis, resident in VMEM.
    # o_ref:     (1, TV, L)          -- L = G*stride >= 128 => lane-dense store.
    # One fused MXU dot per grid step, f32 accumulation, single final store.
    o_ref[0, :, :] = jnp.dot(
        xi_ref[0, :, :], basis_ref[...],
        preferred_element_type=jnp.float32).astype(o_ref.dtype)


def _round_up(a, b):
    return ((a + b - 1) // b) * b


def cosine_decoder_forward(x, *, n_basis, kernel_size, stride, onesided=True,
                           phase=None, tv_max=256, out_dtype=jnp.float32):
    """x: (B, C, n_frames) float32 (PyTorch NCT; C = n_basis if onesided else 2*n_basis).

    Returns (B, 1, T) with T = (n_frames - 1) * stride + kernel_size, matching
    F.conv_transpose1d in the PyTorch module.  `tv_max` is the output-row tile (MXU M);
    raise to 512 on v6e for very long clips.
    """
    B, C, F = x.shape
    assert C == (n_basis if onesided else 2 * n_basis)
    K, S = kernel_size, stride
    T = (F - 1) * S + K

    r = -(-K // S)                   # overlap phases = ceil(K / stride)
    U = F + r - 1                    # hops of S output samples (U*S >= T)
    G = -(-128 // S)                 # hops per super-row -> lane-dense output (G*S >= 128)
    L = G * S                        # output lanes per super-row
    Wf = G + r - 1                   # frames feeding one super-row
    Usup = -(-U // G)                # super-rows
    TV = min(_round_up(Usup, 8), tv_max)
    Usup_pad = _round_up(Usup, TV)
    n_j = Usup_pad // TV
    P = Usup_pad * G + r - 1         # total (zero-)padded frame count

    # ---- banded basis: big[m*C+c, g*S+s] = basis_pad[c, (r-1-(m-g))*S + s] for
    #      0 <= m-g < r, else 0.  Only a (Wf*C, L) constant exists (no O(F^2) matrix).
    basis = make_effective_basis(n_basis, K, S, onesided, phase)      # (C, K) f32
    basis = np.pad(basis, ((0, 0), (0, r * S - K)))                   # (C, r*S)
    phases = basis.reshape(C, r, S)                                   # phases[:,p,:] = cols p*S..
    big = np.zeros((Wf * C, L), np.float32)
    for g in range(G):
        for q in range(r):
            m = g + q
            big[m * C:(m + 1) * C, g * S:(g + 1) * S] = phases[:, r - 1 - q, :]
    big = jnp.asarray(big).astype(jnp.bfloat16)

    # ---- input prep (one XLA fusion): frames on rows, bf16, r-1 leading zero frames,
    #      then the overlapping Wf-frame windows interleaved on the lane axis so every
    #      kernel load is a full aligned block (no in-kernel shifted slices).
    x_fc = jnp.transpose(x, (0, 2, 1)).astype(jnp.bfloat16)           # (B, F, C)
    x_pad = jnp.pad(x_fc, ((0, 0), (r - 1, P - (r - 1) - F), (0, 0))) # (B, P, C)
    cols = [x_pad[:, m:m + Usup_pad * G:G, :] for m in range(Wf)]     # each (B, Usup_pad, C)
    xi = jnp.concatenate(cols, axis=2)                                # (B, Usup_pad, Wf*C)

    cost = pl.CostEstimate(
        flops=2 * B * F * C * K, transcendentals=0,
        bytes_accessed=(B * Usup_pad * Wf * C * 2 + Wf * C * L * 2
                        + B * Usup_pad * L * jnp.dtype(out_dtype).itemsize))

    out = pl.pallas_call(
        _decode_kernel,
        out_shape=jax.ShapeDtypeStruct((B, Usup_pad, L), out_dtype),
        grid=(B, n_j),
        in_specs=[
            # Frame-blocked input: VMEM cost O(TV*Wf*C), independent of clip length.
            pl.BlockSpec((1, TV, Wf * C), lambda b, j: (b, j, 0)),
            # Small banded basis, resident for the whole kernel.
            pl.BlockSpec((Wf * C, L), lambda b, j: (0, 0)),
        ],
        out_specs=pl.BlockSpec((1, TV, L), lambda b, j: (b, j, 0)),
        compiler_params=pltpu.CompilerParams(
            dimension_semantics=("parallel", "parallel"),
            vmem_limit_bytes=32 * 1024 * 1024),
        cost_estimate=cost,
    )(xi, big)

    # (B, Usup_pad, L) -> (B, Usup_pad*L) is a free row-major reshape; trim padding.
    out = out.reshape(B, Usup_pad * L)[:, :T]
    return out[:, None, :]                                            # (B, 1, T)


if __name__ == "__main__":
    n_basis, kernel_size, stride = 16, 16, 8
    batch, n_frames = 2, 8

    key = jax.random.PRNGKey(0)
    x = jax.random.normal(key, (batch, n_basis, n_frames), dtype=jnp.float32)

    fwd = jax.jit(functools.partial(
        cosine_decoder_forward, n_basis=n_basis, kernel_size=kernel_size,
        stride=stride, onesided=True))
    out = jax.block_until_ready(fwd(x))

    # ---- reference: float64 overlap-add using the SAME bf16-quantized inputs the
    # kernel sees, so the tolerance stays tight (catches real regressions). ----
    basis_eff = make_effective_basis(n_basis, kernel_size, stride, onesided=True)
    basis_q = np.asarray(
        jnp.asarray(basis_eff).astype(jnp.bfloat16).astype(jnp.float32),
        dtype=np.float64)
    x_q = np.asarray(
        jnp.asarray(x).astype(jnp.bfloat16).astype(jnp.float32), dtype=np.float64)

    T = (n_frames - 1) * stride + kernel_size
    ref = np.zeros((batch, 1, T), dtype=np.float64)
    for b in range(batch):
        for t in range(n_frames):
            ref[b, 0, t * stride:t * stride + kernel_size] += x_q[b, :, t] @ basis_q

    assert out.shape == (batch, 1, T), out.shape
    np.testing.assert_allclose(np.asarray(out), ref, rtol=1e-4, atol=1e-5)
    print("KERNEL_OK")
</pallas_src>

<mosaic_0001>
module attributes {stable_mosaic.version = 11 : i64} {
  func.func @_decode_kernel(%arg0: i32, %arg1: i32, %arg2: memref<1x8x272xbf16, #tpu.memory_space<vmem>>, %arg3: memref<272x128xbf16, #tpu.memory_space<vmem>>, %arg4: memref<1x8x128xf32, #tpu.memory_space<vmem>>) attributes {dimension_semantics = [#tpu.dimension_semantics<parallel>, #tpu.dimension_semantics<parallel>], iteration_bounds = array<i64: 2, 1>, scalar_prefetch = 0 : i64, scratch_operands = 0 : i64, tpu.core_type = #tpu.core_type<tc>, window_params = [{transform_indices = @transform_0, window_bounds = array<i64: 1, 8, 272>}, {pipeline_mode = #tpu.pipeline_mode<synchronous>, transform_indices = @transform_1, window_bounds = array<i64: 272, 128>}, {transform_indices = @transform_2, window_bounds = array<i64: 1, 8, 128>}]} {
    %c0 = arith.constant 0 : index
    %c0_0 = arith.constant 0 : index
    %c0_1 = arith.constant 0 : index
    %0 = vector.load %arg2[%c0, %c0_0, %c0_1] : memref<1x8x272xbf16, #tpu.memory_space<vmem>>, vector<1x8x272xbf16>
    %1 = vector.shape_cast %0 : vector<1x8x272xbf16> to vector<8x272xbf16>
    %c0_2 = arith.constant 0 : index
    %c0_3 = arith.constant 0 : index
    %2 = vector.load %arg3[%c0_2, %c0_3] : memref<272x128xbf16, #tpu.memory_space<vmem>>, vector<272x128xbf16>
    %cst = arith.constant dense<0.000000e+00> : vector<8x128xf32>
    %3 = tpu.matmul %1, %2, %cst {dimension_numbers = #tpu.dot_dimension_numbers<[1], [0], [0], [1], [0, 0, 1, 1], [], []>} : vector<8x272xbf16>, vector<272x128xbf16>, vector<8x128xf32> -> vector<8x128xf32>
    %c0_4 = arith.constant 0 : index
    %c0_5 = arith.constant 0 : index
    %c0_6 = arith.constant 0 : index
    %4 = vector.load %arg4[%c0_4, %c0_5, %c0_6] : memref<1x8x128xf32, #tpu.memory_space<vmem>>, vector<1x8x128xf32>
    %5 = vector.shape_cast %4 : vector<1x8x128xf32> to vector<8x128xf32>
    %6 = vector.shape_cast %3 : vector<8x128xf32> to vector<1x8x128xf32>
    tpu.vector_store %arg4[%c0_4, %c0_5, %c0_6], %6 {strides = array<i32>} : memref<1x8x128xf32, #tpu.memory_space<vmem>>, vector<1x8x128xf32>,
    return
  }
  func.func @transform_0(%arg0: i32, %arg1: i32) -> (i32, i32, i32) {
    %c0_i32 = arith.constant 0 : i32
    %c0_i32_0 = arith.constant 0 : i32
    return %arg0, %arg1, %c0_i32 : i32, i32, i32
  }
  func.func @transform_1(%arg0: i32, %arg1: i32) -> (i32, i32) {
    %c0_i32 = arith.constant 0 : i32
    %c0_i32_0 = arith.constant 0 : i32
    %c0_i32_1 = arith.constant 0 : i32
    return %c0_i32, %c0_i32_0 : i32, i32
  }
  func.func @transform_2(%arg0: i32, %arg1: i32) -> (i32, i32, i32) {
    %c0_i32 = arith.constant 0 : i32
    %c0_i32_0 = arith.constant 0 : i32
    return %arg0, %arg1, %c0_i32 : i32, i32, i32
  }
}

</mosaic_0001>

<llo_original>
// kernel: cosine_decoder_forward.1
$region0: #{cosine_decoder_forward.1}
  #allocation0 [shape = 'u32[]', space=smem, size = 0x4, offset = 0x4, fixed_abs, tag = 'smem constant byte address 0x4 - core index']
  #allocation1 [shape = 'u32[144,128]{1,0:T(1,128)}', space=vmem, size = 0x12000, scoped, tag = 'internal scratch']
  %s0 = inlined_call_operand.vmem [shape: bf16[2,8,272], index: 0, kind: input, shape index: {}]
  %s1 = inlined_call_operand.vmem [shape: bf16[272,128], index: 1, kind: input, shape index: {}]
  %s2 = inlined_call_operand.vmem [shape: f32[2,8,128], index: 2, kind: output, shape index: {}]
  %s3 = sld [smem:[#allocation0]]
  $region41: #{cosine_decoder_forward.1} parent=0
    _
  %s5 = ssub.s32 1, %s3
  %s6 = scalar_select 0, %s5, %s3
  loop: start=0, step=1, limit=4
  $region2: #{cosine_decoder_forward.1} parent=0 // loop_pre_header
    _
  $region3: #{cosine_decoder_forward.1} parent=0 // loop_header
    %s8 = sphi 0, %s12
    %p9 = scmp.ge.s32.totalorder %s8, 4
    %s15 = sphi 0, %s27
    %s16 = sphi 0, %s23
    %s17 = sphi 0, %s15
    %s18 = sphi 0, %s16
    %s19 = sphi 0, %s17
    %s20 = sphi 0, %s18
    %s32 = sphi 0, %s34
    %s35 = sphi 0, %s32
    %s36 = sphi 0, %s35
    %s52 = sphi 0, %s36
    %s56 = sphi 0, %s56
    %s58 = sphi 0, %s56
    %s59 = sphi 0, %s58
    %s73 = sphi 0, %s59
    %s81 = sphi 0, %s83
    %s84 = sphi 0, %s81
    %s85 = sphi 0, %s84
    %s101 = sphi 0, %s85
  $region4: #{cosine_decoder_forward.1} parent=0 // loop_header_branch
    %11 = sbr.rel (%p9) target = $region8
  $region5: #{cosine_decoder_forward.1} parent=0 // loop_body
    %s13 = ssub.s32 %s8, 1
    %s14 = ssub.s32 %s8, 2
    %s21 = sadd.s32 1, %s16
    %p22 = scmp.ge.s32.totalorder %s21, 1
    %s23 = scalar_select %p22, 0, %s21
    %s24 = sadd.s32 1, %s15
    %s25 = scalar_select %p22, %s24, %s15
    %p26 = scmp.ge.s32.totalorder %s25, 2
    %s27 = scalar_select %p26, 0, %s25
    %s28 = ssub.s32 %s15, %s27
    %s29 = ssub.s32 %s16, %s23
    %s30 = sor.u32 %s28, %s29
    %p31 = scmp.eq.s32.totalorder %s30, 0
    %s33 = sadd.s32 %s32, 1
    %s34 = scalar_select %p31, %s32, %s33
    %p37 = pneg %p31
    %p38 = scmp.eq.s32.totalorder %s8, 1
    %p39 = por %p37, %p38
    %p40 = scmp.ne.s32.totalorder %s32, %s35
    %p41 = scmp.eq.s32.totalorder %s8, 0
    %p42 = por %p40, %p41
    %p43 = scmp.ne.s32.totalorder %s32, %s35
    %p44 = scmp.eq.s32.totalorder %s13, 1
    %p45 = por %p43, %p44
    %p46 = scmp.ne.s32.totalorder %s35, %s36
    %p47 = scmp.eq.s32.totalorder %s13, 0
    %p48 = por %p46, %p47
    %p49 = scmp.ne.s32.totalorder %s35, %s36
    %p50 = scmp.eq.s32.totalorder %s14, 1
    %p51 = por %p49, %p50
    %p53 = scmp.ne.s32.totalorder %s36, %s52
    %p54 = scmp.eq.s32.totalorder %s14, 0
    %p55 = por %p53, %p54
    %s57 = sadd.s32 %s56, 1
    %p60 = scmp.eq.s32.totalorder %s8, 1
    %p61 = scmp.ne.s32.totalorder %s56, %s58
    %p62 = scmp.eq.s32.totalorder %s8, 0
    %p63 = por %p61, %p62
    %p64 = scmp.ne.s32.totalorder %s56, %s58
    %p65 = scmp.eq.s32.totalorder %s13, 1
    %p66 = por %p64, %p65
    %p67 = scmp.ne.s32.totalorder %s58, %s59
    %p68 = scmp.eq.s32.totalorder %s13, 0
    %p69 = por %p67, %p68
    %p70 = scmp.ne.s32.totalorder %s58, %s59
    %p71 = scmp.eq.s32.totalorder %s14, 1
    %p72 = por %p70, %p71
    %p74 = scmp.ne.s32.totalorder %s59, %s73
    %p75 = scmp.eq.s32.totalorder %s14, 0
    %p76 = por %p74, %p75
    %s77 = ssub.s32 %s15, %s27
    %s78 = ssub.s32 %s16, %s23
    %s79 = sor.u32 %s77, %s78
    %p80 = scmp.eq.s32.totalorder %s79, 0
    %s82 = sadd.s32 %s81, 1
    %s83 = scalar_select %p80, %s81, %s82
    %p86 = pneg %p80
    %p87 = scmp.eq.s32.totalorder %s8, 1
    %p88 = por %p86, %p87
    %p89 = scmp.ne.s32.totalorder %s81, %s84
    %p90 = scmp.eq.s32.totalorder %s8, 0
    %p91 = por %p89, %p90
    %p92 = scmp.ne.s32.totalorder %s81, %s84
    %p93 = scmp.eq.s32.totalorder %s13, 1
    %p94 = por %p92, %p93
    %p95 = scmp.ne.s32.totalorder %s84, %s85
    %p96 = scmp.eq.s32.totalorder %s13, 0
    %p97 = por %p95, %p96
    %p98 = scmp.ne.s32.totalorder %s84, %s85
    %p99 = scmp.eq.s32.totalorder %s14, 1
    %p100 = por %p98, %p99
    %p102 = scmp.ne.s32.totalorder %s85, %s101
    %p103 = scmp.eq.s32.totalorder %s14, 0
    %p104 = por %p102, %p103
    %p105 = scmp.le.s32.totalorder 1, %s8
    %p106 = scmp.lt.s32.totalorder %s8, 3
    %p107 = pnand %p105, %p106
    %p108 = pneg %p107
    // Predicated region
    $region9: #{cosine_decoder_forward.1} parent=5 // pred_check
      _
    $region10: #{cosine_decoder_forward.1} parent=5 // pred_check_branch
      %110 = sbr.rel (%p107) target = $region12
    $region11: #{cosine_decoder_forward.1} parent=5 // pred_region
      %s111 = ssub.s32 %s8, 1
      // Predicated region
      $region13: #{cosine_decoder_forward.1} parent=11 // pred_check
        %p112 = pneg %p69
      $region14: #{cosine_decoder_forward.1} parent=11 // pred_check_branch
        %114 = sbr.rel (%p112) target = $region16
      $region15: #{cosine_decoder_forward.1} parent=11 // pred_region
        _
      $region16: #{cosine_decoder_forward.1} parent=11 // pred_fallthru
        _
    $region12: #{cosine_decoder_forward.1} parent=5 // pred_fallthru
      _
    %p115 = scmp.lt.s32.totalorder %s8, 2
    // Predicated region
    $region17: #{cosine_decoder_forward.1} parent=5 // pred_check
      %p116 = pneg %p115
    $region18: #{cosine_decoder_forward.1} parent=5 // pred_check_branch
      %118 = sbr.rel (%p116) target = $region20
    $region19: #{cosine_decoder_forward.1} parent=5 // pred_region
      // Predicated region
      $region21: #{cosine_decoder_forward.1} parent=19 // pred_check
        %p119 = pneg %p42
      $region22: #{cosine_decoder_forward.1} parent=19 // pred_check_branch
        %121 = sbr.rel (%p119) target = $region24
      $region23: #{cosine_decoder_forward.1} parent=19 // pred_region
        %p122 = scmp.lt.s32.totalorder %s15, 1
        %s123 = scalar_select %p122, %s15, 1
        %p124 = scmp.lt.s32.totalorder %s16, 0
        %s125 = scalar_select %p124, %s16, 0
        %s126 = smul.addr %s125, 3
        %s127 = smul.addr %s123, 3
        %s128 = sadd.s32 %s126, %s127
        %s129 = smul.addr %s128, 4
        %s130 = scalar_lea.vmem %s0, %s129
      $region24: #{cosine_decoder_forward.1} parent=19 // pred_fallthru
        _
    $region20: #{cosine_decoder_forward.1} parent=5 // pred_fallthru
      _
    %p131 = scmp.le.s32.totalorder 1, %s8
    %p132 = scmp.lt.s32.totalorder %s8, 3
    %p133 = pnand %p131, %p132
    %p134 = pneg %p133
    // Predicated region
    $region25: #{cosine_decoder_forward.1} parent=5 // pred_check
      _
    $region26: #{cosine_decoder_forward.1} parent=5 // pred_check_branch
      %136 = sbr.rel (%p133) target = $region28
    $region27: #{cosine_decoder_forward.1} parent=5 // pred_region
      %s137 = ssub.s32 %s8, 1
      %p138 = scmp.lt.s32.totalorder %s17, 1
      %s139 = scalar_select %p138, %s17, 1
      %p140 = scmp.lt.s32.totalorder %s18, 0
      %s141 = scalar_select %p140, %s18, 0
      %s142 = smul.addr %s141, 3
      %s143 = smul.addr %s139, 3
      %s144 = sadd.s32 %s142, %s143
      %s145 = smul.addr %s144, 4
      %s146 = scalar_lea.vmem %s0, %s145
      %p147 = pneg %p48
      %p148 = pneg %p45
      %p149 = pneg %p69
      %p150 = pneg %p66
      %p151 = pneg %p97
      %p152 = pneg %p94
      %p153 = scmp.lt.s32.totalorder %s17, 1
      %s154 = scalar_select %p153, %s17, 1
      %p155 = scmp.lt.s32.totalorder %s18, 0
      %s156 = scalar_select %p155, %s18, 0
      %s157 = sadd.s32 %s156, %s154
      %s158 = smul.addr %s157, 8
      %s159 = scalar_lea.vmem %s2, %s158
      %p160 = scmp.lt.s32.totalorder %s17, 1
      %s161 = scalar_select %p160, %s17, 1
      %p162 = scmp.lt.s32.totalorder %s18, 0
      %s163 = scalar_select %p162, %s18, 0
      %s164 = smul.addr %s163, 3
      %s165 = smul.addr %s161, 3
      %s166 = sadd.s32 %s164, %s165
      %s167 = smul.addr %s166, 4
      %s168 = scalar_lea.vmem %s0, %s167
      %p169 = scmp.lt.s32.totalorder %s17, 1
      %s170 = scalar_select %p169, %s17, 1
      %p171 = scmp.lt.s32.totalorder %s18, 0
      %s172 = scalar_select %p171, %s18, 0
      %s173 = sadd.s32 %s172, %s170
      %s174 = smul.addr %s173, 8
      %s175 = scalar_lea.vmem %s2, %s174
      %v177 = vld [vmem:[%s168] sm:$0xff]
      %v178 = vld [vmem:[%s168 + $0x8] sm:$0xf]
      %v179 = vld [vmem:[%s1] sm:$0xf]
      %v180 = vld [vmem:[%s1 + $0x4] sm:$0xf]
      %v181 = vld [vmem:[%s1 + $0x8] sm:$0xf]
      %v182 = vld [vmem:[%s1 + $0xc] sm:$0xf]
      %v183 = vld [vmem:[%s1 + $0x10] sm:$0xf]
      %v184 = vld [vmem:[%s1 + $0x14] sm:$0xf]
      %v185 = vld [vmem:[%s1 + $0x18] sm:$0xf]
      %v186 = vld [vmem:[%s1 + $0x1c] sm:$0xf]
      %v187 = vld [vmem:[%s1 + $0x20] sm:$0xf]
      %v188 = vld [vmem:[%s1 + $0x24] sm:$0xf]
      %v189 = vld [vmem:[%s1 + $0x28] sm:$0xf]
      %v190 = vld [vmem:[%s1 + $0x2c] sm:$0xf]
      %v191 = vld [vmem:[%s1 + $0x30] sm:$0xf]
      %v192 = vld [vmem:[%s1 + $0x34] sm:$0xf]
      %v193 = vld [vmem:[%s1 + $0x38] sm:$0xf]
      %v194 = vld [vmem:[%s1 + $0x3c] sm:$0xf]
      %v195 = vld [vmem:[%s1 + $0x40] sm:$0xf]
      %v196 = vld [vmem:[%s1 + $0x44] sm:$0xf]
      %v197 = vld [vmem:[%s1 + $0x48] sm:$0xf]
      %v198 = vld [vmem:[%s1 + $0x4c] sm:$0xf]
      %v199 = vld [vmem:[%s1 + $0x50] sm:$0xf]
      %v200 = vld [vmem:[%s1 + $0x54] sm:$0xf]
      %v201 = vld [vmem:[%s1 + $0x58] sm:$0xf]
      %v202 = vld [vmem:[%s1 + $0x5c] sm:$0xf]
      %v203 = vld [vmem:[%s1 + $0x60] sm:$0xf]
      %v204 = vld [vmem:[%s1 + $0x64] sm:$0xf]
      %v205 = vld [vmem:[%s1 + $0x68] sm:$0xf]
      %v206 = vld [vmem:[%s1 + $0x6c] sm:$0xf]
      %v207 = vld [vmem:[%s1 + $0x70] sm:$0xf]
      %v208 = vld [vmem:[%s1 + $0x74] sm:$0xf]
      %v209 = vld [vmem:[%s1 + $0x78] sm:$0xf]
      %v210 = vld [vmem:[%s1 + $0x7c] sm:$0xf]
      %v211 = vld [vmem:[%s1 + $0x80] sm:$0xf]
      %v212 = vld [vmem:[%s1 + $0x84] sm:$0xf]
      %v215 = vunpack.c.l.b16 %v177
      %v216 = vunpack.c.h.b16 %v177
      %v217 = vunpack.c.l.b16 %v178
      %v218 = vpack.c.b16 %v215, %v215
      %v219 = vpack.c.b16 %v216, %v216
      %v220 = vpack.c.b16 %v217, %v217
      %v257 = vunpack.c.l.b16 %v179
      %v258 = vunpack.c.l.b16 %v180
      %v259 = vunpack.c.l.b16 %v181
      %v260 = vunpack.c.l.b16 %v182
      %v261 = vunpack.c.l.b16 %v183
      %v262 = vunpack.c.l.b16 %v184
      %v263 = vunpack.c.l.b16 %v185
      %v264 = vunpack.c.l.b16 %v186
      %v265 = vunpack.c.l.b16 %v187
      %v266 = vunpack.c.l.b16 %v188
      %v267 = vunpack.c.l.b16 %v189
      %v268 = vunpack.c.l.b16 %v190
      %v269 = vunpack.c.l.b16 %v191
      %v270 = vunpack.c.l.b16 %v192
      %v271 = vunpack.c.l.b16 %v193
      %v272 = vunpack.c.l.b16 %v194
      %v273 = vunpack.c.l.b16 %v195
      %v274 = vunpack.c.l.b16 %v196
      %v275 = vunpack.c.l.b16 %v197
      %v276 = vunpack.c.l.b16 %v198
      %v277 = vunpack.c.l.b16 %v199
      %v278 = vunpack.c.l.b16 %v200
      %v279 = vunpack.c.l.b16 %v201
      %v280 = vunpack.c.l.b16 %v202
      %v281 = vunpack.c.l.b16 %v203
      %v282 = vunpack.c.l.b16 %v204
      %v283 = vunpack.c.l.b16 %v205
      %v284 = vunpack.c.l.b16 %v206
      %v285 = vunpack.c.l.b16 %v207
      %v286 = vunpack.c.l.b16 %v208
      %v287 = vunpack.c.l.b16 %v209
      %v288 = vunpack.c.l.b16 %v210
      %v289 = vunpack.c.l.b16 %v211
      %v290 = vunpack.c.l.b16 %v212
      %v291 = vpack.c.b16 %v258, %v257
      %v292 = vpack.c.b16 %v260, %v259
      %v293 = vpack.c.b16 %v262, %v261
      %v294 = vpack.c.b16 %v264, %v263
      %v295 = vpack.c.b16 %v266, %v265
      %v296 = vpack.c.b16 %v268, %v267
      %v297 = vpack.c.b16 %v270, %v269
      %v298 = vpack.c.b16 %v272, %v271
      %v299 = vpack.c.b16 %v274, %v273
      %v300 = vpack.c.b16 %v276, %v275
      %v301 = vpack.c.b16 %v278, %v277
      %v302 = vpack.c.b16 %v280, %v279
      %v303 = vpack.c.b16 %v282, %v281
      %v304 = vpack.c.b16 %v284, %v283
      %v305 = vpack.c.b16 %v286, %v285
      %v306 = vpack.c.b16 %v288, %v287
      %v307 = vpack.c.b16 %v290, %v289
      %vm325 = vcmask 130048
      %v327 = vsel %vm325, %v220, 0
      %329 = vmatprep.subr.bf16.mxu0 0
      %330 = vmatpush1.bf16.msra.mxu0 %v298
      %331 = vmatprep.subr.bf16.mxu0 0
      %332 = vmatpush1.bf16.msra.mxu0 %v297
      %333 = vmatprep.subr.bf16.mxu0 0
      %334 = vmatpush1.bf16.msra.mxu0 %v296
      %335 = vmatprep.subr.bf16.mxu0 0
      %336 = vmatpush1.bf16.msra.mxu0 %v295
      %337 = vmatprep.subr.bf16.mxu0 0
      %338 = vmatpush1.bf16.msra.mxu0 %v294
      %339 = vmatprep.subr.bf16.mxu0 0
      %340 = vmatpush1.bf16.msra.mxu0 %v293
      %341 = vmatprep.subr.bf16.mxu0 0
      %342 = vmatpush1.bf16.msra.mxu0 %v292
      %343 = vmatprep.subr.bf16.mxu0 0
      %344 = vmatpush1.bf16.msra.mxu0 %v291
      %345 = vmatprep.subr.bf16.mxu0 0
      %346 = vmatpush2.bf16.msra.mxu0 %v306
      %347 = vmatprep.subr.bf16.mxu0 0
      %348 = vmatpush2.bf16.msra.mxu0 %v305
      %349 = vmatprep.subr.bf16.mxu0 0
      %350 = vmatpush2.bf16.msra.mxu0 %v304
      %351 = vmatprep.subr.bf16.mxu0 0
      %352 = vmatpush2.bf16.msra.mxu0 %v303
      %353 = vmatprep.subr.bf16.mxu0 0
      %354 = vmatpush2.bf16.msra.mxu0 %v302
      %355 = vmatprep.subr.bf16.mxu0 0
      %356 = vmatpush2.bf16.msra.mxu0 %v301
      %357 = vmatprep.subr.bf16.mxu0 0
      %358 = vmatpush2.bf16.msra.mxu0 %v300
      %359 = vmatprep.subr.bf16.mxu0 0
      %360 = vmatpush2.bf16.msra.mxu0 %v299
      %361 = vmatprep.mubr.bf16.mxu0 %v219
      %362 = vmatmul.mubr.bf16.gmra.mxu0 %v218
      %v363 = vpop.f32.mrf.mxu0
      %v364 = vadd.f32 0.0, %v363
      %v365 = vpop.f32.mrf.mxu0
      %v366 = vpop.f32.mrf.mxu0
      %v367 = vpop.f32.mrf.mxu0
      %368 = vdwg.mxu0
      %369 = vmatprep.subr.bf16.mxu0 0
      %370 = vmatpush1.bf16.msra.mxu0 0
      %371 = vmatprep.subr.bf16.mxu0 0
      %372 = vmatpush1.bf16.msra.mxu0 0
      %373 = vmatprep.subr.bf16.mxu0 0
      %374 = vmatpush1.bf16.msra.mxu0 0
      %375 = vmatprep.subr.bf16.mxu0 0
      %376 = vmatpush1.bf16.msra.mxu0 0
      %377 = vmatprep.subr.bf16.mxu0 0
      %378 = vmatpush1.bf16.msra.mxu0 0
      %379 = vmatprep.subr.bf16.mxu0 0
      %380 = vmatpush1.bf16.msra.mxu0 0
      %381 = vmatprep.subr.bf16.mxu0 0
      %382 = vmatpush1.bf16.msra.mxu0 0
      %383 = vmatprep.subr.bf16.mxu0 0
      %384 = vmatpush1.bf16.msra.mxu0 %v307
      %385 = vmatprep.subr.bf16.mxu0 0
      %386 = vmatpush2.bf16.msra.mxu0 0
      %387 = vmatprep.subr.bf16.mxu0 0
      %388 = vmatpush2.bf16.msra.mxu0 0
      %389 = vmatprep.subr.bf16.mxu0 0
      %390 = vmatpush2.bf16.msra.mxu0 0
      %391 = vmatprep.subr.bf16.mxu0 0
      %392 = vmatpush2.bf16.msra.mxu0 0
      %393 = vmatprep.subr.bf16.mxu0 0
      %394 = vmatpush2.bf16.msra.mxu0 0
      %395 = vmatprep.subr.bf16.mxu0 0
      %396 = vmatpush2.bf16.msra.mxu0 0
      %397 = vmatprep.subr.bf16.mxu0 0
      %398 = vmatpush2.bf16.msra.mxu0 0
      %399 = vmatprep.subr.bf16.mxu0 0
      %400 = vmatpush2.bf16.msra.mxu0 0
      %401 = vmatprep.mubr.bf16.mxu0 0
      %402 = vmatmul.mubr.bf16.gmra.mxu0 %v327
      %v403 = vpop.f32.mrf.mxu0
      %v404 = vadd.f32 %v364, %v403
      %v405 = vpop.f32.mrf.mxu0
      %v406 = vpop.f32.mrf.mxu0
      %v407 = vpop.f32.mrf.mxu0
      %408 = vdwg.mxu0
      %409 = vst [vmem:[%s175] sm:$0xff] %v404
      %p410 = scmp.lt.s32.totalorder %s17, 1
      %s411 = scalar_select %p410, %s17, 1
      %p412 = scmp.lt.s32.totalorder %s18, 0
      %s413 = scalar_select %p412, %s18, 0
      %s414 = sadd.s32 %s413, %s411
      %s415 = smul.addr %s414, 8
      %s416 = scalar_lea.vmem %s2, %s415
      // Predicated region
      $region29: #{cosine_decoder_forward.1} parent=27 // pred_check
        %p417 = pneg %p94
      $region30: #{cosine_decoder_forward.1} parent=27 // pred_check_branch
        %419 = sbr.rel (%p417) target = $region32
      $region31: #{cosine_decoder_forward.1} parent=27 // pred_region
        _
      $region32: #{cosine_decoder_forward.1} parent=27 // pred_fallthru
        _
    $region28: #{cosine_decoder_forward.1} parent=5 // pred_fallthru
      _
    %p420 = scmp.le.s32.totalorder 2, %s8
    // Predicated region
    $region33: #{cosine_decoder_forward.1} parent=5 // pred_check
      %p421 = pneg %p420
    $region34: #{cosine_decoder_forward.1} parent=5 // pred_check_branch
      %423 = sbr.rel (%p421) target = $region36
    $region35: #{cosine_decoder_forward.1} parent=5 // pred_region
      %s424 = ssub.s32 %s8, 2
      // Predicated region
      $region37: #{cosine_decoder_forward.1} parent=35 // pred_check
        %p425 = pneg %p100
      $region38: #{cosine_decoder_forward.1} parent=35 // pred_check_branch
        %427 = sbr.rel (%p425) target = $region40
      $region39: #{cosine_decoder_forward.1} parent=35 // pred_region
        %p428 = scmp.lt.s32.totalorder %s19, 1
        %s429 = scalar_select %p428, %s19, 1
        %p430 = scmp.lt.s32.totalorder %s20, 0
        %s431 = scalar_select %p430, %s20, 0
        %s432 = sadd.s32 %s431, %s429
        %s433 = smul.addr %s432, 8
        %s434 = scalar_lea.vmem %s2, %s433
      $region40: #{cosine_decoder_forward.1} parent=35 // pred_fallthru
        _
    $region36: #{cosine_decoder_forward.1} parent=5 // pred_fallthru
      _
  $region6: #{cosine_decoder_forward.1} parent=0 // loop_footer
    %s12 = sadd.s32 1, %s8
  $region7: #{cosine_decoder_forward.1} parent=0 // loop_footer_branch
    %7 = sbr.rel target = $region3
  $region8: #{cosine_decoder_forward.1} parent=0 // loop_exit
    _

</llo_original>
